<compile_context>
chip_gen: v7x
topology: tpu7x:2x2x1
jax: 0.10.0
libtpu: 0.0.40
codegen_flags: <defaults>
</compile_context>

<pallas_src>
import functools

import jax
import jax.numpy as jnp
from jax.experimental import pallas as pl
from jax.experimental.pallas import tpu as pltpu


def _round_up(x, m):
    return ((x + m - 1) // m) * m


def _softplus(x):
    # numerically-stable softplus, matches torch.nn.functional.softplus
    return jnp.maximum(x, 0.0) + jnp.log1p(jnp.exp(-jnp.abs(x)))


def _elementwise_dtype():
    # bf16 VALU exists on v6e/v7x; v5e (and older) have no bf16 VPU -> keep f32.
    try:
        kind = jax.devices()[0].device_kind.lower()
    except Exception:
        return jnp.float32
    return jnp.bfloat16 if ("v6" in kind or "v7" in kind) else jnp.float32


def decoder_kernel(rep_ref, tx_ref, w1t_ref, w23_ref, b23_ref, w4_ref, b4_ref,
                   out_ref, *, ew_dtype):
    # rep_ref: (1, 128) f32       -- rep @ W1[:128,:] + b1 (precomputed in wrapper)
    # tx_ref : (TILE_F, 1) f32    -- target x values for this tile
    # out_ref: (TILE_F, 2) f32    -- packed [mu | sigma]

    # fc1 (factored): rep half hoisted to the wrapper; target half is a rank-1
    # VPU broadcast-FMA.  Stays f32, then cast once for the MXU.
    h = rep_ref[...] + tx_ref[...] * w1t_ref[...]          # (TILE_F, 128) f32
    h = jnp.maximum(h, 0.0).astype(jnp.bfloat16)

    # fc2 / fc3: bf16 MXU operands, f32 accumulation; bias + ReLU in ew_dtype
    # (bf16 on v6e/v7x, f32 on v5e).
    h = jnp.dot(h, w23_ref[0], preferred_element_type=jnp.float32)
    h = jnp.maximum(h.astype(ew_dtype) + b23_ref[0], 0.0).astype(jnp.bfloat16)
    h = jnp.dot(h, w23_ref[1], preferred_element_type=jnp.float32)
    h = jnp.maximum(h.astype(ew_dtype) + b23_ref[1], 0.0).astype(jnp.bfloat16)

    # fc4 (128 -> 2) on the MXU, f32 epilogue.
    y = jnp.dot(h, w4_ref[...], preferred_element_type=jnp.float32) + b4_ref[...]

    # mu = lane 0 (raw), sigma = 0.1 + 0.9 * softplus(lane 1); single packed store.
    lane = jax.lax.broadcasted_iota(jnp.int32, y.shape, 1)
    sig = 0.1 + 0.9 * _softplus(y)
    out_ref[...] = jnp.where(lane == 0, y, sig)


def init_decoder_params(key):
    """Deterministic init mimicking nn.Linear default (U(-1/sqrt(fan_in), ...))."""
    dims = [(129, 128), (128, 128), (128, 128), (128, 2)]
    params = []
    for i, (fin, fout) in enumerate(dims):
        kw, kb = jax.random.split(jax.random.fold_in(key, i))
        bound = 1.0 / (fin ** 0.5)
        w = jax.random.uniform(kw, (fin, fout), jnp.float32, -bound, bound)
        b = jax.random.uniform(kb, (1, fout), jnp.float32, -bound, bound)
        params.append((w, b))
    return params


def decoder_forward(representations, target_x, params, *, tile_f_cap=2048):
    """
    representations: (B, 128) float32
    target_x:        (B, F, 1) float32
    returns (mu, sigma), each (B, F, 1)
    # TODO(synk): torch.distributions.Normal has no Pallas equivalent; mu/sigma
    # fully parameterize it.
    """
    B, F, dim_pred = target_x.shape
    assert dim_pred == 1, "fc1 width (129) fixes dim_pred == 1"
    (w1, b1), (w2, b2), (w3, b3), (w4, b4) = params

    ew_dtype = _elementwise_dtype()

    # Hoist the grid-invariant rep half of fc1 (including the bias) to a single
    # (B,128)@(128,128) XLA matmul.
    rep_h = (representations.astype(jnp.float32) @ w1[:128, :] + b1).reshape(B, 1, 128)

    w1_tx = w1[128:129, :]                                   # (1, 128)   f32
    w23 = jnp.stack([w2, w3], axis=0).astype(jnp.bfloat16)   # (2,128,128) bf16
    b23 = jnp.stack([b2, b3], axis=0).astype(ew_dtype)       # (2,1,128)
    w4_b = w4.astype(jnp.bfloat16)                            # (128, 2)   bf16

    # Row-tile over F.  Prefer one big tile (per-step overhead dominates), but
    # when B == 1 split F into >= 2 tiles so both v7x TensorCores are used.
    if F <= tile_f_cap:
        tile_f = _round_up(F, 8)
        if B == 1 and F > 8:
            tile_f = _round_up(pl.cdiv(F, 2), 8)
    else:
        tile_f = tile_f_cap
    f_pad = _round_up(F, tile_f)

    tx = target_x.astype(jnp.float32)
    if f_pad != F:
        tx = jnp.pad(tx, ((0, 0), (0, f_pad - F), (0, 0)))

    grid = (B, f_pad // tile_f)

    def const(shape):
        return pl.BlockSpec(shape, lambda b, f: (0,) * len(shape))

    out = pl.pallas_call(
        functools.partial(decoder_kernel, ew_dtype=ew_dtype),
        out_shape=jax.ShapeDtypeStruct((B, f_pad, 2), jnp.float32),
        grid=grid,
        in_specs=[
            pl.BlockSpec((None, 1, 128), lambda b, f: (b, 0, 0)),       # rep_h
            pl.BlockSpec((None, tile_f, 1), lambda b, f: (b, f, 0)),    # target_x tile
            const(w1_tx.shape),
            const(w23.shape),
            const(b23.shape),
            const(w4_b.shape),
            const(b4.shape),
        ],
        out_specs=pl.BlockSpec((None, tile_f, 2), lambda b, f: (b, f, 0)),
        compiler_params=pltpu.CompilerParams(
            dimension_semantics=("parallel", "parallel"),
            vmem_limit_bytes=32 * 1024 * 1024,
        ),
    )(rep_h, tx, w1_tx, w23, b23, w4_b, b4)

    mu = out[:, :F, 0:1]
    sigma = out[:, :F, 1:2]
    return mu, sigma


def decoder_reference(representations, target_x, params):
    B, F, _ = target_x.shape
    rep_tiled = jnp.broadcast_to(representations[:, None, :], (B, F, 128))
    x = jnp.concatenate([rep_tiled, target_x], axis=-1).reshape(B * F, -1)
    (w1, b1), (w2, b2), (w3, b3), (w4, b4) = params
    h = jax.nn.relu(x @ w1 + b1)
    h = jax.nn.relu(h @ w2 + b2)
    h = jax.nn.relu(h @ w3 + b3)
    y = h @ w4 + b4
    y = y.reshape(B, F, 2)
    mu, log_sigma = y[..., 0:1], y[..., 1:2]
    sigma = 0.1 + 0.9 * jax.nn.softplus(log_sigma)
    return mu, sigma


if __name__ == "__main__":
    key = jax.random.PRNGKey(0)
    k_rep, k_tx, k_par = jax.random.split(key, 3)
    params = init_decoder_params(k_par)

    # (B=2, F=8): single F-tile per batch element.
    # (B=1, F=40): exercises padding + the 2-tile split (megacore path).
    for (B, F) in [(2, 8), (1, 40)]:
        representations = jax.random.normal(jax.random.fold_in(k_rep, F),
                                            (B, 128), jnp.float32)
        target_x = jax.random.normal(jax.random.fold_in(k_tx, F),
                                     (B, F, 1), jnp.float32)

        mu, sigma = decoder_forward(representations, target_x, params)
        jax.block_until_ready((mu, sigma))

        mu_ref, sigma_ref = decoder_reference(representations, target_x, params)
        assert mu.shape == (B, F, 1) and sigma.shape == (B, F, 1)
        # bf16 matmul operands (and bf16 bias/ReLU on v6e/v7x) -> relaxed
        # tolerance vs the f32 reference.
        assert jnp.allclose(mu, mu_ref, atol=3e-2, rtol=3e-2)
        assert jnp.allclose(sigma, sigma_ref, atol=3e-2, rtol=3e-2)
        assert bool(jnp.all(sigma > 0.0))

    print("KERNEL_OK")
</pallas_src>

<mosaic_0001>
module attributes {stable_mosaic.version = 11 : i64} {
  func.func @decoder_kernel(%arg0: i32, %arg1: i32, %arg2: memref<1x1x128xf32, #tpu.memory_space<vmem>>, %arg3: memref<1x8x1xf32, #tpu.memory_space<vmem>>, %arg4: memref<1x128xf32, #tpu.memory_space<vmem>>, %arg5: memref<2x128x128xbf16, #tpu.memory_space<vmem>>, %arg6: memref<2x1x128xf32, #tpu.memory_space<vmem>>, %arg7: memref<128x2xbf16, #tpu.memory_space<vmem>>, %arg8: memref<1x2xf32, #tpu.memory_space<vmem>>, %arg9: memref<1x8x2xf32, #tpu.memory_space<vmem>>) attributes {dimension_semantics = [#tpu.dimension_semantics<parallel>, #tpu.dimension_semantics<parallel>], iteration_bounds = array<i64: 2, 1>, scalar_prefetch = 0 : i64, scratch_operands = 0 : i64, tpu.core_type = #tpu.core_type<tc>, window_params = [{transform_indices = @transform_0, window_bounds = array<i64: 1, 1, 128>}, {transform_indices = @transform_1, window_bounds = array<i64: 1, 8, 1>}, {pipeline_mode = #tpu.pipeline_mode<synchronous>, transform_indices = @transform_2, window_bounds = array<i64: 1, 128>}, {pipeline_mode = #tpu.pipeline_mode<synchronous>, transform_indices = @transform_3, window_bounds = array<i64: 2, 128, 128>}, {pipeline_mode = #tpu.pipeline_mode<synchronous>, transform_indices = @transform_4, window_bounds = array<i64: 2, 1, 128>}, {pipeline_mode = #tpu.pipeline_mode<synchronous>, transform_indices = @transform_5, window_bounds = array<i64: 128, 2>}, {pipeline_mode = #tpu.pipeline_mode<synchronous>, transform_indices = @transform_6, window_bounds = array<i64: 1, 2>}, {transform_indices = @transform_7, window_bounds = array<i64: 1, 8, 2>}]} {
    %c0 = arith.constant 0 : index
    %c0_0 = arith.constant 0 : index
    %c0_1 = arith.constant 0 : index
    %0 = vector.load %arg2[%c0, %c0_0, %c0_1] : memref<1x1x128xf32, #tpu.memory_space<vmem>>, vector<1x1x128xf32>
    %1 = vector.shape_cast %0 : vector<1x1x128xf32> to vector<1x128xf32>
    %c0_2 = arith.constant 0 : index
    %c0_3 = arith.constant 0 : index
    %c0_4 = arith.constant 0 : index
    %2 = vector.load %arg3[%c0_2, %c0_3, %c0_4] : memref<1x8x1xf32, #tpu.memory_space<vmem>>, vector<1x8x1xf32>
    %3 = vector.shape_cast %2 : vector<1x8x1xf32> to vector<8x1xf32>
    %c0_5 = arith.constant 0 : index
    %c0_6 = arith.constant 0 : index
    %4 = vector.load %arg4[%c0_5, %c0_6] : memref<1x128xf32, #tpu.memory_space<vmem>>, vector<1x128xf32>
    %5 = vector.broadcast %3 : vector<8x1xf32> to vector<8x128xf32>
    %6 = vector.broadcast %4 : vector<1x128xf32> to vector<8x128xf32>
    %7 = arith.mulf %5, %6 : vector<8x128xf32>
    %8 = vector.broadcast %1 : vector<1x128xf32> to vector<8x128xf32>
    %9 = arith.addf %8, %7 : vector<8x128xf32>
    %cst = arith.constant 0.000000e+00 : f32
    %10 = vector.broadcast %cst : f32 to vector<8x128xf32>
    %11 = arith.maximumf %9, %10 : vector<8x128xf32>
    %12 = arith.truncf %11 : vector<8x128xf32> to vector<8x128xbf16>
    %c0_7 = arith.constant 0 : index
    %c0_8 = arith.constant 0 : index
    %c0_9 = arith.constant 0 : index
    %13 = vector.load %arg5[%c0_7, %c0_8, %c0_9] : memref<2x128x128xbf16, #tpu.memory_space<vmem>>, vector<1x128x128xbf16>
    %14 = vector.shape_cast %13 : vector<1x128x128xbf16> to vector<128x128xbf16>
    %cst_10 = arith.constant dense<0.000000e+00> : vector<8x128xf32>
    %15 = tpu.matmul %12, %14, %cst_10 {dimension_numbers = #tpu.dot_dimension_numbers<[1], [0], [0], [1], [0, 0, 1, 1], [], []>} : vector<8x128xbf16>, vector<128x128xbf16>, vector<8x128xf32> -> vector<8x128xf32>
    %c0_11 = arith.constant 0 : index
    %c0_12 = arith.constant 0 : index
    %c0_13 = arith.constant 0 : index
    %16 = vector.load %arg6[%c0_11, %c0_12, %c0_13] : memref<2x1x128xf32, #tpu.memory_space<vmem>>, vector<1x1x128xf32>
    %17 = vector.shape_cast %16 : vector<1x1x128xf32> to vector<1x128xf32>
    %18 = vector.broadcast %17 : vector<1x128xf32> to vector<8x128xf32>
    %19 = arith.addf %15, %18 : vector<8x128xf32>
    %cst_14 = arith.constant 0.000000e+00 : f32
    %20 = vector.broadcast %cst_14 : f32 to vector<8x128xf32>
    %21 = arith.maximumf %19, %20 : vector<8x128xf32>
    %22 = arith.truncf %21 : vector<8x128xf32> to vector<8x128xbf16>
    %c1 = arith.constant 1 : index
    %c0_15 = arith.constant 0 : index
    %c0_16 = arith.constant 0 : index
    %23 = vector.load %arg5[%c1, %c0_15, %c0_16] : memref<2x128x128xbf16, #tpu.memory_space<vmem>>, vector<1x128x128xbf16>
    %24 = vector.shape_cast %23 : vector<1x128x128xbf16> to vector<128x128xbf16>
    %cst_17 = arith.constant dense<0.000000e+00> : vector<8x128xf32>
    %25 = tpu.matmul %22, %24, %cst_17 {dimension_numbers = #tpu.dot_dimension_numbers<[1], [0], [0], [1], [0, 0, 1, 1], [], []>} : vector<8x128xbf16>, vector<128x128xbf16>, vector<8x128xf32> -> vector<8x128xf32>
    %c1_18 = arith.constant 1 : index
    %c0_19 = arith.constant 0 : index
    %c0_20 = arith.constant 0 : index
    %26 = vector.load %arg6[%c1_18, %c0_19, %c0_20] : memref<2x1x128xf32, #tpu.memory_space<vmem>>, vector<1x1x128xf32>
    %27 = vector.shape_cast %26 : vector<1x1x128xf32> to vector<1x128xf32>
    %28 = vector.broadcast %27 : vector<1x128xf32> to vector<8x128xf32>
    %29 = arith.addf %25, %28 : vector<8x128xf32>
    %cst_21 = arith.constant 0.000000e+00 : f32
    %30 = vector.broadcast %cst_21 : f32 to vector<8x128xf32>
    %31 = arith.maximumf %29, %30 : vector<8x128xf32>
    %32 = arith.truncf %31 : vector<8x128xf32> to vector<8x128xbf16>
    %c0_22 = arith.constant 0 : index
    %c0_23 = arith.constant 0 : index
    %33 = vector.load %arg7[%c0_22, %c0_23] : memref<128x2xbf16, #tpu.memory_space<vmem>>, vector<128x2xbf16>
    %cst_24 = arith.constant dense<0.000000e+00> : vector<8x2xf32>
    %34 = tpu.matmul %32, %33, %cst_24 {dimension_numbers = #tpu.dot_dimension_numbers<[1], [0], [0], [1], [0, 0, 1, 1], [], []>} : vector<8x128xbf16>, vector<128x2xbf16>, vector<8x2xf32> -> vector<8x2xf32>
    %c0_25 = arith.constant 0 : index
    %c0_26 = arith.constant 0 : index
    %35 = vector.load %arg8[%c0_25, %c0_26] : memref<1x2xf32, #tpu.memory_space<vmem>>, vector<1x2xf32>
    %36 = vector.broadcast %35 : vector<1x2xf32> to vector<8x2xf32>
    %37 = arith.addf %34, %36 : vector<8x2xf32>
    %38 = tpu.iota {dimensions = array<i32: 1>} : vector<8x2xi32>
    %cst_27 = arith.constant 0.000000e+00 : f32
    %39 = vector.broadcast %cst_27 : f32 to vector<8x2xf32>
    %40 = arith.maximumf %37, %39 : vector<8x2xf32>
    %41 = math.absf %37 : vector<8x2xf32>
    %cst_28 = arith.constant 0.000000e+00 : f32
    %42 = vector.broadcast %cst_28 : f32 to vector<8x2xf32>
    %43 = arith.subf %42, %41 : vector<8x2xf32>
    %44 = math.exp %43 : vector<8x2xf32>
    %45 = math.log1p %44 : vector<8x2xf32>
    %46 = arith.addf %40, %45 : vector<8x2xf32>
    %cst_29 = arith.constant 0.899999976 : f32
    %47 = vector.broadcast %cst_29 : f32 to vector<8x2xf32>
    %48 = arith.mulf %47, %46 : vector<8x2xf32>
    %cst_30 = arith.constant 1.000000e-01 : f32
    %49 = vector.broadcast %cst_30 : f32 to vector<8x2xf32>
    %50 = arith.addf %49, %48 : vector<8x2xf32>
    %c0_i32 = arith.constant 0 : i32
    %51 = vector.broadcast %c0_i32 : i32 to vector<8x2xi32>
    %52 = arith.cmpi eq, %38, %51 : vector<8x2xi32>
    %53 = arith.select %52, %37, %50 : vector<8x2xi1>, vector<8x2xf32>
    %c0_31 = arith.constant 0 : index
    %c0_32 = arith.constant 0 : index
    %c0_33 = arith.constant 0 : index
    %54 = vector.load %arg9[%c0_31, %c0_32, %c0_33] : memref<1x8x2xf32, #tpu.memory_space<vmem>>, vector<1x8x2xf32>
    %55 = vector.shape_cast %54 : vector<1x8x2xf32> to vector<8x2xf32>
    %56 = vector.shape_cast %53 : vector<8x2xf32> to vector<1x8x2xf32>
    tpu.vector_store %arg9[%c0_31, %c0_32, %c0_33], %56 {strides = array<i32>} : memref<1x8x2xf32, #tpu.memory_space<vmem>>, vector<1x8x2xf32>,
    return
  }
  func.func @transform_0(%arg0: i32, %arg1: i32) -> (i32, i32, i32) {
    %c0_i32 = arith.constant 0 : i32
    %c0_i32_0 = arith.constant 0 : i32
    %c0_i32_1 = arith.constant 0 : i32
    return %arg0, %c0_i32, %c0_i32_0 : i32, i32, i32
  }
  func.func @transform_1(%arg0: i32, %arg1: i32) -> (i32, i32, i32) {
    %c0_i32 = arith.constant 0 : i32
    %c0_i32_0 = arith.constant 0 : i32
    return %arg0, %arg1, %c0_i32 : i32, i32, i32
  }
  func.func @transform_2(%arg0: i32, %arg1: i32) -> (i32, i32) {
    %c0_i32 = arith.constant 0 : i32
    %c0_i32_0 = arith.constant 0 : i32
    %c0_i32_1 = arith.constant 0 : i32
    return %c0_i32, %c0_i32_0 : i32, i32
  }
  func.func @transform_3(%arg0: i32, %arg1: i32) -> (i32, i32, i32) {
    %c0_i32 = arith.constant 0 : i32
    %c0_i32_0 = arith.constant 0 : i32
    %c0_i32_1 = arith.constant 0 : i32
    %c0_i32_2 = arith.constant 0 : i32
    return %c0_i32, %c0_i32_0, %c0_i32_1 : i32, i32, i32
  }
  func.func @transform_4(%arg0: i32, %arg1: i32) -> (i32, i32, i32) {
    %c0_i32 = arith.constant 0 : i32
    %c0_i32_0 = arith.constant 0 : i32
    %c0_i32_1 = arith.constant 0 : i32
    %c0_i32_2 = arith.constant 0 : i32
    return %c0_i32, %c0_i32_0, %c0_i32_1 : i32, i32, i32
  }
  func.func @transform_5(%arg0: i32, %arg1: i32) -> (i32, i32) {
    %c0_i32 = arith.constant 0 : i32
    %c0_i32_0 = arith.constant 0 : i32
    %c0_i32_1 = arith.constant 0 : i32
    return %c0_i32, %c0_i32_0 : i32, i32
  }
  func.func @transform_6(%arg0: i32, %arg1: i32) -> (i32, i32) {
    %c0_i32 = arith.constant 0 : i32
    %c0_i32_0 = arith.constant 0 : i32
    %c0_i32_1 = arith.constant 0 : i32
    return %c0_i32, %c0_i32_0 : i32, i32
  }
  func.func @transform_7(%arg0: i32, %arg1: i32) -> (i32, i32, i32) {
    %c0_i32 = arith.constant 0 : i32
    %c0_i32_0 = arith.constant 0 : i32
    return %arg0, %arg1, %c0_i32 : i32, i32, i32
  }
}

</mosaic_0001>

<llo_original>
// kernel: tpu_custom_call.1
$region0: #{tpu_custom_call.1}
  #allocation0 [shape = 'u32[]', space=smem, size = 0x4, offset = 0x4, fixed_abs, tag = 'smem constant byte address 0x4 - core index']
  #allocation1 [shape = 'u32[144,128]{1,0:T(1,128)}', space=vmem, size = 0x12000, scoped, tag = 'internal scratch']
  %s0 = inlined_call_operand.vmem [shape: f32[2,1,128], index: 0, kind: input, shape index: {}]
  %s1 = inlined_call_operand.vmem [shape: f32[2,8,1], index: 1, kind: input, shape index: {}]
  %s2 = inlined_call_operand.vmem [shape: f32[1,128], index: 2, kind: input, shape index: {}]
  %s3 = inlined_call_operand.hbm [shape: bf16[2,128,128], index: 3, kind: input, shape index: {}]
  %s4 = inlined_call_operand.vmem [shape: f32[2,1,128], index: 4, kind: input, shape index: {}]
  %s5 = inlined_call_operand.vmem [shape: bf16[128,2], index: 5, kind: input, shape index: {}]
  %s6 = inlined_call_operand.vmem [shape: f32[1,2], index: 6, kind: input, shape index: {}]
  %s7 = inlined_call_operand.vmem [shape: f32[2,8,2], index: 7, kind: output, shape index: {}]
  %s8 = sld [smem:[#allocation0]]
  $region65: #{tpu_custom_call.1} parent=0
    _
  %s10 = ssub.s32 1, %s8
  %s11 = scalar_select 0, %s10, %s8
  $region1: #{tpu_custom_call.1} parent=0
    #allocation2 [shape = 'u8[65536]{0}', space=vmem, size = 0x10000, scoped, tag = 'input window, operand 3, single buffered']
    #allocation3 [shape = 's32[2]{0}', space=sflag, size = 0x8, scoped, tag = 'scoped memory for tpu_custom_call.1']
    %12 = vsyncpa [#allocation3], 0
    loop: start=0, step=1, limit=4
    $region2: #{tpu_custom_call.1} parent=1 // loop_pre_header
      _
    $region3: #{tpu_custom_call.1} parent=1 // loop_header
      %s14 = sphi 0, %s18
      %p15 = scmp.ge.s32.totalorder %s14, 4
      %s21 = sphi 0, %s33
      %s22 = sphi 0, %s29
      %s23 = sphi 0, %s21
      %s24 = sphi 0, %s22
      %s25 = sphi 0, %s23
      %s26 = sphi 0, %s24
      %s36 = sphi 0, %s38
      %s39 = sphi 0, %s36
      %s40 = sphi 0, %s39
      %s56 = sphi 0, %s40
      %s64 = sphi 0, %s66
      %s67 = sphi 0, %s64
      %s68 = sphi 0, %s67
      %s84 = sphi 0, %s68
      %s88 = sphi 0, %s88
      %s90 = sphi 0, %s88
      %s91 = sphi 0, %s90
      %s105 = sphi 0, %s91
      %s109 = sphi 0, %s109
      %s111 = sphi 0, %s109
      %s112 = sphi 0, %s111
      %s126 = sphi 0, %s112
      %s130 = sphi 0, %s130
      %s132 = sphi 0, %s130
      %s133 = sphi 0, %s132
      %s147 = sphi 0, %s133
      %s151 = sphi 0, %s151
      %s153 = sphi 0, %s151
      %s154 = sphi 0, %s153
      %s168 = sphi 0, %s154
      %s172 = sphi 0, %s172
      %s174 = sphi 0, %s172
      %s175 = sphi 0, %s174
      %s189 = sphi 0, %s175
      %s197 = sphi 0, %s199
      %s200 = sphi 0, %s197
      %s201 = sphi 0, %s200
      %s217 = sphi 0, %s201
    $region4: #{tpu_custom_call.1} parent=1 // loop_header_branch
      %17 = sbr.rel (%p15) target = $region8
    $region5: #{tpu_custom_call.1} parent=1 // loop_body
      %s19 = ssub.s32 %s14, 1
      %s20 = ssub.s32 %s14, 2
      %s27 = sadd.s32 1, %s22
      %p28 = scmp.ge.s32.totalorder %s27, 1
      %s29 = scalar_select %p28, 0, %s27
      %s30 = sadd.s32 1, %s21
      %s31 = scalar_select %p28, %s30, %s21
      %p32 = scmp.ge.s32.totalorder %s31, 2
      %s33 = scalar_select %p32, 0, %s31
      %s34 = ssub.s32 %s21, %s33
      %p35 = scmp.eq.s32.totalorder %s34, 0
      %s37 = sadd.s32 %s36, 1
      %s38 = scalar_select %p35, %s36, %s37
      %p41 = pneg %p35
      %p42 = scmp.eq.s32.totalorder %s14, 1
      %p43 = por %p41, %p42
      %p44 = scmp.ne.s32.totalorder %s36, %s39
      %p45 = scmp.eq.s32.totalorder %s14, 0
      %p46 = por %p44, %p45
      %p47 = scmp.ne.s32.totalorder %s36, %s39
      %p48 = scmp.eq.s32.totalorder %s19, 1
      %p49 = por %p47, %p48
      %p50 = scmp.ne.s32.totalorder %s39, %s40
      %p51 = scmp.eq.s32.totalorder %s19, 0
      %p52 = por %p50, %p51
      %p53 = scmp.ne.s32.totalorder %s39, %s40
      %p54 = scmp.eq.s32.totalorder %s20, 1
      %p55 = por %p53, %p54
      %p57 = scmp.ne.s32.totalorder %s40, %s56
      %p58 = scmp.eq.s32.totalorder %s20, 0
      %p59 = por %p57, %p58
      %s60 = ssub.s32 %s21, %s33
      %s61 = ssub.s32 %s22, %s29
      %s62 = sor.u32 %s60, %s61
      %p63 = scmp.eq.s32.totalorder %s62, 0
      %s65 = sadd.s32 %s64, 1
      %s66 = scalar_select %p63, %s64, %s65
      %p69 = pneg %p63
      %p70 = scmp.eq.s32.totalorder %s14, 1
      %p71 = por %p69, %p70
      %p72 = scmp.ne.s32.totalorder %s64, %s67
      %p73 = scmp.eq.s32.totalorder %s14, 0
      %p74 = por %p72, %p73
      %p75 = scmp.ne.s32.totalorder %s64, %s67
      %p76 = scmp.eq.s32.totalorder %s19, 1
      %p77 = por %p75, %p76
      %p78 = scmp.ne.s32.totalorder %s67, %s68
      %p79 = scmp.eq.s32.totalorder %s19, 0
      %p80 = por %p78, %p79
      %p81 = scmp.ne.s32.totalorder %s67, %s68
      %p82 = scmp.eq.s32.totalorder %s20, 1
      %p83 = por %p81, %p82
      %p85 = scmp.ne.s32.totalorder %s68, %s84
      %p86 = scmp.eq.s32.totalorder %s20, 0
      %p87 = por %p85, %p86
      %s89 = sadd.s32 %s88, 1
      %p92 = scmp.eq.s32.totalorder %s14, 1
      %p93 = scmp.ne.s32.totalorder %s88, %s90
      %p94 = scmp.eq.s32.totalorder %s14, 0
      %p95 = por %p93, %p94
      %p96 = scmp.ne.s32.totalorder %s88, %s90
      %p97 = scmp.eq.s32.totalorder %s19, 1
      %p98 = por %p96, %p97
      %p99 = scmp.ne.s32.totalorder %s90, %s91
      %p100 = scmp.eq.s32.totalorder %s19, 0
      %p101 = por %p99, %p100
      %p102 = scmp.ne.s32.totalorder %s90, %s91
      %p103 = scmp.eq.s32.totalorder %s20, 1
      %p104 = por %p102, %p103
      %p106 = scmp.ne.s32.totalorder %s91, %s105
      %p107 = scmp.eq.s32.totalorder %s20, 0
      %p108 = por %p106, %p107
      %s110 = sadd.s32 %s109, 1
      %p113 = scmp.eq.s32.totalorder %s14, 1
      %p114 = scmp.ne.s32.totalorder %s109, %s111
      %p115 = scmp.eq.s32.totalorder %s14, 0
      %p116 = por %p114, %p115
      %p117 = scmp.ne.s32.totalorder %s109, %s111
      %p118 = scmp.eq.s32.totalorder %s19, 1
      %p119 = por %p117, %p118
      %p120 = scmp.ne.s32.totalorder %s111, %s112
      %p121 = scmp.eq.s32.totalorder %s19, 0
      %p122 = por %p120, %p121
      %p123 = scmp.ne.s32.totalorder %s111, %s112
      %p124 = scmp.eq.s32.totalorder %s20, 1
      %p125 = por %p123, %p124
      %p127 = scmp.ne.s32.totalorder %s112, %s126
      %p128 = scmp.eq.s32.totalorder %s20, 0
      %p129 = por %p127, %p128
      %s131 = sadd.s32 %s130, 1
      %p134 = scmp.eq.s32.totalorder %s14, 1
      %p135 = scmp.ne.s32.totalorder %s130, %s132
      %p136 = scmp.eq.s32.totalorder %s14, 0
      %p137 = por %p135, %p136
      %p138 = scmp.ne.s32.totalorder %s130, %s132
      %p139 = scmp.eq.s32.totalorder %s19, 1
      %p140 = por %p138, %p139
      %p141 = scmp.ne.s32.totalorder %s132, %s133
      %p142 = scmp.eq.s32.totalorder %s19, 0
      %p143 = por %p141, %p142
      %p144 = scmp.ne.s32.totalorder %s132, %s133
      %p145 = scmp.eq.s32.totalorder %s20, 1
      %p146 = por %p144, %p145
      %p148 = scmp.ne.s32.totalorder %s133, %s147
      %p149 = scmp.eq.s32.totalorder %s20, 0
      %p150 = por %p148, %p149
      %s152 = sadd.s32 %s151, 1
      %p155 = scmp.eq.s32.totalorder %s14, 1
      %p156 = scmp.ne.s32.totalorder %s151, %s153
      %p157 = scmp.eq.s32.totalorder %s14, 0
      %p158 = por %p156, %p157
      %p159 = scmp.ne.s32.totalorder %s151, %s153
      %p160 = scmp.eq.s32.totalorder %s19, 1
      %p161 = por %p159, %p160
      %p162 = scmp.ne.s32.totalorder %s153, %s154
      %p163 = scmp.eq.s32.totalorder %s19, 0
      %p164 = por %p162, %p163
      %p165 = scmp.ne.s32.totalorder %s153, %s154
      %p166 = scmp.eq.s32.totalorder %s20, 1
      %p167 = por %p165, %p166
      %p169 = scmp.ne.s32.totalorder %s154, %s168
      %p170 = scmp.eq.s32.totalorder %s20, 0
      %p171 = por %p169, %p170
      %s173 = sadd.s32 %s172, 1
      %p176 = scmp.eq.s32.totalorder %s14, 1
      %p177 = scmp.ne.s32.totalorder %s172, %s174
      %p178 = scmp.eq.s32.totalorder %s14, 0
      %p179 = por %p177, %p178
      %p180 = scmp.ne.s32.totalorder %s172, %s174
      %p181 = scmp.eq.s32.totalorder %s19, 1
      %p182 = por %p180, %p181
      %p183 = scmp.ne.s32.totalorder %s174, %s175
      %p184 = scmp.eq.s32.totalorder %s19, 0
      %p185 = por %p183, %p184
      %p186 = scmp.ne.s32.totalorder %s174, %s175
      %p187 = scmp.eq.s32.totalorder %s20, 1
      %p188 = por %p186, %p187
      %p190 = scmp.ne.s32.totalorder %s175, %s189
      %p191 = scmp.eq.s32.totalorder %s20, 0
      %p192 = por %p190, %p191
      %s193 = ssub.s32 %s21, %s33
      %s194 = ssub.s32 %s22, %s29
      %s195 = sor.u32 %s193, %s194
      %p196 = scmp.eq.s32.totalorder %s195, 0
      %s198 = sadd.s32 %s197, 1
      %s199 = scalar_select %p196, %s197, %s198
      %p202 = pneg %p196
      %p203 = scmp.eq.s32.totalorder %s14, 1
      %p204 = por %p202, %p203
      %p205 = scmp.ne.s32.totalorder %s197, %s200
      %p206 = scmp.eq.s32.totalorder %s14, 0
      %p207 = por %p205, %p206
      %p208 = scmp.ne.s32.totalorder %s197, %s200
      %p209 = scmp.eq.s32.totalorder %s19, 1
      %p210 = por %p208, %p209
      %p211 = scmp.ne.s32.totalorder %s200, %s201
      %p212 = scmp.eq.s32.totalorder %s19, 0
      %p213 = por %p211, %p212
      %p214 = scmp.ne.s32.totalorder %s200, %s201
      %p215 = scmp.eq.s32.totalorder %s20, 1
      %p216 = por %p214, %p215
      %p218 = scmp.ne.s32.totalorder %s201, %s217
      %p219 = scmp.eq.s32.totalorder %s20, 0
      %p220 = por %p218, %p219
      %p221 = scmp.le.s32.totalorder 1, %s14
      %p222 = scmp.lt.s32.totalorder %s14, 3
      %p223 = pnand %p221, %p222
      %p224 = pneg %p223
      // Predicated region
      $region9: #{tpu_custom_call.1} parent=5 // pred_check
        _
      $region10: #{tpu_custom_call.1} parent=5 // pred_check_branch
        %226 = sbr.rel (%p223) target = $region12
      $region11: #{tpu_custom_call.1} parent=5 // pred_region
        %s227 = ssub.s32 %s14, 1
        // Predicated region
        $region13: #{tpu_custom_call.1} parent=11 // pred_check
          %p228 = pneg %p101
        $region14: #{tpu_custom_call.1} parent=11 // pred_check_branch
          %230 = sbr.rel (%p228) target = $region16
        $region15: #{tpu_custom_call.1} parent=11 // pred_region
          _
        $region16: #{tpu_custom_call.1} parent=11 // pred_fallthru
          _
        // Predicated region
        $region17: #{tpu_custom_call.1} parent=11 // pred_check
          %p231 = pneg %p122
        $region18: #{tpu_custom_call.1} parent=11 // pred_check_branch
          %233 = sbr.rel (%p231) target = $region20
        $region19: #{tpu_custom_call.1} parent=11 // pred_region
          %s235 = ssub.s32 2048, 2048
          %236 = vsyncadd [#allocation3], %s235
          %s237 = sshll.u32 [#allocation2], 4
          %s238 = int_to_ptr.vmem [resolvable:$true] %s237
          %243 = dma.hbm_to_vmem [thread:$0]  %s3, 2048, %s238, [#allocation3], 64, 64, 4
        $region20: #{tpu_custom_call.1} parent=11 // pred_fallthru
          _
        // Predicated region
        $region21: #{tpu_custom_call.1} parent=11 // pred_check
          %p244 = pneg %p143
        $region22: #{tpu_custom_call.1} parent=11 // pred_check_branch
          %246 = sbr.rel (%p244) target = $region24
        $region23: #{tpu_custom_call.1} parent=11 // pred_region
          _
        $region24: #{tpu_custom_call.1} parent=11 // pred_fallthru
          _
        // Predicated region
        $region25: #{tpu_custom_call.1} parent=11 // pred_check
          %p247 = pneg %p164
        $region26: #{tpu_custom_call.1} parent=11 // pred_check_branch
          %249 = sbr.rel (%p247) target = $region28
        $region27: #{tpu_custom_call.1} parent=11 // pred_region
          _
        $region28: #{tpu_custom_call.1} parent=11 // pred_fallthru
          _
        // Predicated region
        $region29: #{tpu_custom_call.1} parent=11 // pred_check
          %p250 = pneg %p185
        $region30: #{tpu_custom_call.1} parent=11 // pred_check_branch
          %252 = sbr.rel (%p250) target = $region32
        $region31: #{tpu_custom_call.1} parent=11 // pred_region
          _
        $region32: #{tpu_custom_call.1} parent=11 // pred_fallthru
          _
      $region12: #{tpu_custom_call.1} parent=5 // pred_fallthru
        _
      %p253 = scmp.lt.s32.totalorder %s14, 2
      // Predicated region
      $region33: #{tpu_custom_call.1} parent=5 // pred_check
        %p254 = pneg %p253
      $region34: #{tpu_custom_call.1} parent=5 // pred_check_branch
        %256 = sbr.rel (%p254) target = $region36
      $region35: #{tpu_custom_call.1} parent=5 // pred_region
        // Predicated region
        $region37: #{tpu_custom_call.1} parent=35 // pred_check
          %p257 = pneg %p46
        $region38: #{tpu_custom_call.1} parent=35 // pred_check_branch
          %259 = sbr.rel (%p257) target = $region40
        $region39: #{tpu_custom_call.1} parent=35 // pred_region
          %p260 = scmp.lt.s32.totalorder %s21, 1
          %s261 = scalar_select %p260, %s21, 1
          %s262 = scalar_lea.vmem %s0, %s261
        $region40: #{tpu_custom_call.1} parent=35 // pred_fallthru
          _
        // Predicated region
        $region41: #{tpu_custom_call.1} parent=35 // pred_check
          %p263 = pneg %p74
        $region42: #{tpu_custom_call.1} parent=35 // pred_check_branch
          %265 = sbr.rel (%p263) target = $region44
        $region43: #{tpu_custom_call.1} parent=35 // pred_region
          %p266 = scmp.lt.s32.totalorder %s21, 1
          %s267 = scalar_select %p266, %s21, 1
          %p268 = scmp.lt.s32.totalorder %s22, 0
          %s269 = scalar_select %p268, %s22, 0
          %s270 = sadd.s32 %s269, %s267
          %s271 = smul.addr %s270, 8
          %s272 = scalar_lea.vmem %s1, %s271
        $region44: #{tpu_custom_call.1} parent=35 // pred_fallthru
          _
      $region36: #{tpu_custom_call.1} parent=5 // pred_fallthru
        _
      %p273 = scmp.le.s32.totalorder 1, %s14
      %p274 = scmp.lt.s32.totalorder %s14, 3
      %p275 = pnand %p273, %p274
      %p276 = pneg %p275
      // Predicated region
      $region45: #{tpu_custom_call.1} parent=5 // pred_check
        _
      $region46: #{tpu_custom_call.1} parent=5 // pred_check_branch
        %278 = sbr.rel (%p275) target = $region48
      $region47: #{tpu_custom_call.1} parent=5 // pred_region
        %s279 = ssub.s32 %s14, 1
        // Predicated region
        $region49: #{tpu_custom_call.1} parent=47 // pred_check
          %p280 = pneg %p122
        $region50: #{tpu_custom_call.1} parent=47 // pred_check_branch
          %282 = sbr.rel (%p280) target = $region52
        $region51: #{tpu_custom_call.1} parent=47 // pred_region
          %283 = dma.done [#allocation3], 2048
        $region52: #{tpu_custom_call.1} parent=47 // pred_fallthru
          _
        %p284 = scmp.lt.s32.totalorder %s23, 1
        %s285 = scalar_select %p284, %s23, 1
        %s286 = scalar_lea.vmem %s0, %s285
        %p287 = pneg %p52
        %p288 = pneg %p49
        %p289 = scmp.lt.s32.totalorder %s23, 1
        %s290 = scalar_select %p289, %s23, 1
        %p291 = scmp.lt.s32.totalorder %s24, 0
        %s292 = scalar_select %p291, %s24, 0
        %s293 = sadd.s32 %s292, %s290
        %s294 = smul.addr %s293, 8
        %s295 = scalar_lea.vmem %s1, %s294
        %p296 = pneg %p80
        %p297 = pneg %p77
        %p298 = pneg %p101
        %p299 = pneg %p98
        %p300 = pneg %p122
        %p301 = pneg %p119
        %p302 = pneg %p143
        %p303 = pneg %p140
        %p304 = pneg %p164
        %p305 = pneg %p161
        %p306 = pneg %p185
        %p307 = pneg %p182
        %p308 = pneg %p213
        %p309 = pneg %p210
        %p310 = scmp.lt.s32.totalorder %s23, 1
        %s311 = scalar_select %p310, %s23, 1
        %p312 = scmp.lt.s32.totalorder %s24, 0
        %s313 = scalar_select %p312, %s24, 0
        %s314 = sadd.s32 %s313, %s311
        %s315 = smul.addr %s314, 8
        %s316 = scalar_lea.vmem %s7, %s315
        %p317 = scmp.lt.s32.totalorder %s23, 1
        %s318 = scalar_select %p317, %s23, 1
        %s319 = scalar_lea.vmem %s0, %s318
        %p320 = scmp.lt.s32.totalorder %s23, 1
        %s321 = scalar_select %p320, %s23, 1
        %p322 = scmp.lt.s32.totalorder %s24, 0
        %s323 = scalar_select %p322, %s24, 0
        %s324 = sadd.s32 %s323, %s321
        %s325 = smul.addr %s324, 8
        %s326 = scalar_lea.vmem %s1, %s325
        %p327 = scmp.lt.s32.totalorder %s23, 1
        %s328 = scalar_select %p327, %s23, 1
        %p329 = scmp.lt.s32.totalorder %s24, 0
        %s330 = scalar_select %p329, %s24, 0
        %s331 = sadd.s32 %s330, %s328
        %s332 = smul.addr %s331, 8
        %s333 = scalar_lea.vmem %s7, %s332
        %v335 = vld [vmem:[%s319] sm:$0x1]
        %v336 = vld [vmem:[%s326] sm:$0xff]
        %v337 = vld [vmem:[%s2] sm:$0x1]
        %339 = vset.pattern.permute.xlu0 0
        %340 = vperm.xlu0 %339, %v336
        %v341 = vpop.permute.xlu0 %340
        %v344 = vlaneseq
        %v345 = vshrl.u32 %v344, 7
        %v346 = vsub.s32 0, %v345
        %v347 = vrot.slane %v337, %v346
        %v349 = vmul.f32 %v341, %v347
        %v351 = vlaneseq
        %v352 = vshrl.u32 %v351, 7
        %v353 = vsub.s32 0, %v352
        %v354 = vrot.slane %v335, %v353
        %v356 = vadd.f32 %v354, %v349
        %v357 = vmax.f32 %v356, 0.0
        %v358 = vpack.c.bf16 %v357, %v357
        %v359 = vld [vmem:[#allocation2] sm:$0xf]
        %v360 = vld [vmem:[#allocation2 + $0x4] sm:$0xf]
        %v361 = vld [vmem:[#allocation2 + $0x8] sm:$0xf]
        %v362 = vld [vmem:[#allocation2 + $0xc] sm:$0xf]
        %v363 = vld [vmem:[#allocation2 + $0x10] sm:$0xf]
        %v364 = vld [vmem:[#allocation2 + $0x14] sm:$0xf]
        %v365 = vld [vmem:[#allocation2 + $0x18] sm:$0xf]
        %v366 = vld [vmem:[#allocation2 + $0x1c] sm:$0xf]
        %v367 = vld [vmem:[#allocation2 + $0x20] sm:$0xf]
        %v368 = vld [vmem:[#allocation2 + $0x24] sm:$0xf]
        %v369 = vld [vmem:[#allocation2 + $0x28] sm:$0xf]
        %v370 = vld [vmem:[#allocation2 + $0x2c] sm:$0xf]
        %v371 = vld [vmem:[#allocation2 + $0x30] sm:$0xf]
        %v372 = vld [vmem:[#allocation2 + $0x34] sm:$0xf]
        %v373 = vld [vmem:[#allocation2 + $0x38] sm:$0xf]
        %v374 = vld [vmem:[#allocation2 + $0x3c] sm:$0xf]
        %v375 = vld [vmem:[%s4] sm:$0x1]
        %v377 = vlaneseq
        %v378 = vshrl.u32 %v377, 7
        %v379 = vsub.s32 0, %v378
        %v380 = vrot.slane %v375, %v379
        %v398 = vunpack.c.l.b16 %v359
        %v399 = vunpack.c.l.b16 %v360
        %v400 = vunpack.c.l.b16 %v361
        %v401 = vunpack.c.l.b16 %v362
        %v402 = vunpack.c.l.b16 %v363
        %v403 = vunpack.c.l.b16 %v364
        %v404 = vunpack.c.l.b16 %v365
        %v405 = vunpack.c.l.b16 %v366
        %v406 = vunpack.c.l.b16 %v367
        %v407 = vunpack.c.l.b16 %v368
        %v408 = vunpack.c.l.b16 %v369
        %v409 = vunpack.c.l.b16 %v370
        %v410 = vunpack.c.l.b16 %v371
        %v411 = vunpack.c.l.b16 %v372
        %v412 = vunpack.c.l.b16 %v373
        %v413 = vunpack.c.l.b16 %v374
        %v414 = vpack.c.b16 %v399, %v398
        %v415 = vpack.c.b16 %v401, %v400
        %v416 = vpack.c.b16 %v403, %v402
        %v417 = vpack.c.b16 %v405, %v404
        %v418 = vpack.c.b16 %v407, %v406
        %v419 = vpack.c.b16 %v409, %v408
        %v420 = vpack.c.b16 %v411, %v410
        %v421 = vpack.c.b16 %v413, %v412
        %430 = vmatprep.subr.bf16.mxu0 0
        %431 = vmatpush1.bf16.msra.mxu0 %v414
        %432 = vmatprep.subr.bf16.mxu0 0
        %433 = vmatpush1.bf16.msra.mxu0 %v415
        %434 = vmatprep.subr.bf16.mxu0 0
        %435 = vmatpush1.bf16.msra.mxu0 %v416
        %436 = vmatprep.subr.bf16.mxu0 0
        %437 = vmatpush1.bf16.msra.mxu0 %v417
        %438 = vmatprep.subr.bf16.mxu0 0
        %439 = vmatpush1.bf16.msra.mxu0 %v418
        %440 = vmatprep.subr.bf16.mxu0 0
        %441 = vmatpush1.bf16.msra.mxu0 %v419
        %442 = vmatprep.subr.bf16.mxu0 0
        %443 = vmatpush1.bf16.msra.mxu0 %v420
        %444 = vmatprep.subr.bf16.mxu0 0
        %445 = vmatpush1.bf16.msra.mxu0 %v421
        %446 = vmatprep.subr.bf16.mxu0 0
        %447 = vmatpush1.bf16.msra.mxu0 0
        %448 = vmatprep.subr.bf16.mxu0 0
        %449 = vmatpush1.bf16.msra.mxu0 0
        %450 = vmatprep.subr.bf16.mxu0 0
        %451 = vmatpush1.bf16.msra.mxu0 0
        %452 = vmatprep.subr.bf16.mxu0 0
        %453 = vmatpush1.bf16.msra.mxu0 0
        %454 = vmatprep.subr.bf16.mxu0 0
        %455 = vmatpush1.bf16.msra.mxu0 0
        %456 = vmatprep.subr.bf16.mxu0 0
        %457 = vmatpush1.bf16.msra.mxu0 0
        %458 = vmatprep.subr.bf16.mxu0 0
        %459 = vmatpush1.bf16.msra.mxu0 0
        %460 = vmatprep.subr.bf16.mxu0 0
        %461 = vmatpush1.bf16.msra.mxu0 0
        %462 = vmatprep.mubr.bf16.mxu0 0
        %463 = vmatmul.mubr.bf16.gmra.mrb[0].mxu0 %v358
        %v464 = vpop.f32.mrb[0].mxu0
        %v465 = vadd.f32 %v380, %v464
        %v466 = vpop.f32.mrb[0].mxu0
        %v467 = vpop.f32.mrb[0].mxu0
        %v468 = vpop.f32.mrb[0].mxu0
        %469 = vdwg.mxu0
        %v470 = vmax.f32 %v465, 0.0
        %v471 = vpack.c.bf16 %v470, %v470
        %s472 = scalar_lea.vmem [#allocation2], 64
        %v473 = vld [vmem:[%s472] sm:$0xf]
        %v474 = vld [vmem:[%s472 + $0x4] sm:$0xf]
        %v475 = vld [vmem:[%s472 + $0x8] sm:$0xf]
        %v476 = vld [vmem:[%s472 + $0xc] sm:$0xf]
        %v477 = vld [vmem:[%s472 + $0x10] sm:$0xf]
        %v478 = vld [vmem:[%s472 + $0x14] sm:$0xf]
        %v479 = vld [vmem:[%s472 + $0x18] sm:$0xf]
        %v480 = vld [vmem:[%s472 + $0x1c] sm:$0xf]
        %v481 = vld [vmem:[%s472 + $0x20] sm:$0xf]
        %v482 = vld [vmem:[%s472 + $0x24] sm:$0xf]
        %v483 = vld [vmem:[%s472 + $0x28] sm:$0xf]
        %v484 = vld [vmem:[%s472 + $0x2c] sm:$0xf]
        %v485 = vld [vmem:[%s472 + $0x30] sm:$0xf]
        %v486 = vld [vmem:[%s472 + $0x34] sm:$0xf]
        %v487 = vld [vmem:[%s472 + $0x38] sm:$0xf]
        %v488 = vld [vmem:[%s472 + $0x3c] sm:$0xf]
        %s489 = scalar_lea.vmem %s4, 1
        %v490 = vld [vmem:[%s489] sm:$0x1]
        %v492 = vlaneseq
        %v493 = vshrl.u32 %v492, 7
        %v494 = vsub.s32 0, %v493
        %v495 = vrot.slane %v490, %v494
        %v513 = vunpack.c.l.b16 %v473
        %v514 = vunpack.c.l.b16 %v474
        %v515 = vunpack.c.l.b16 %v475
        %v516 = vunpack.c.l.b16 %v476
        %v517 = vunpack.c.l.b16 %v477
        %v518 = vunpack.c.l.b16 %v478
        %v519 = vunpack.c.l.b16 %v479
        %v520 = vunpack.c.l.b16 %v480
        %v521 = vunpack.c.l.b16 %v481
        %v522 = vunpack.c.l.b16 %v482
        %v523 = vunpack.c.l.b16 %v483
        %v524 = vunpack.c.l.b16 %v484
        %v525 = vunpack.c.l.b16 %v485
        %v526 = vunpack.c.l.b16 %v486
        %v527 = vunpack.c.l.b16 %v487
        %v528 = vunpack.c.l.b16 %v488
        %v529 = vpack.c.b16 %v514, %v513
        %v530 = vpack.c.b16 %v516, %v515
        %v531 = vpack.c.b16 %v518, %v517
        %v532 = vpack.c.b16 %v520, %v519
        %v533 = vpack.c.b16 %v522, %v521
        %v534 = vpack.c.b16 %v524, %v523
        %v535 = vpack.c.b16 %v526, %v525
        %v536 = vpack.c.b16 %v528, %v527
        %545 = vmatprep.subr.bf16.mxu0 0
        %546 = vmatpush1.bf16.msra.mxu0 %v529
        %547 = vmatprep.subr.bf16.mxu0 0
        %548 = vmatpush1.bf16.msra.mxu0 %v530
        %549 = vmatprep.subr.bf16.mxu0 0
        %550 = vmatpush1.bf16.msra.mxu0 %v531
        %551 = vmatprep.subr.bf16.mxu0 0
        %552 = vmatpush1.bf16.msra.mxu0 %v532
        %553 = vmatprep.subr.bf16.mxu0 0
        %554 = vmatpush1.bf16.msra.mxu0 %v533
        %555 = vmatprep.subr.bf16.mxu0 0
        %556 = vmatpush1.bf16.msra.mxu0 %v534
        %557 = vmatprep.subr.bf16.mxu0 0
        %558 = vmatpush1.bf16.msra.mxu0 %v535
        %559 = vmatprep.subr.bf16.mxu0 0
        %560 = vmatpush1.bf16.msra.mxu0 %v536
        %561 = vmatprep.subr.bf16.mxu0 0
        %562 = vmatpush1.bf16.msra.mxu0 0
        %563 = vmatprep.subr.bf16.mxu0 0
        %564 = vmatpush1.bf16.msra.mxu0 0
        %565 = vmatprep.subr.bf16.mxu0 0
        %566 = vmatpush1.bf16.msra.mxu0 0
        %567 = vmatprep.subr.bf16.mxu0 0
        %568 = vmatpush1.bf16.msra.mxu0 0
        %569 = vmatprep.subr.bf16.mxu0 0
        %570 = vmatpush1.bf16.msra.mxu0 0
        %571 = vmatprep.subr.bf16.mxu0 0
        %572 = vmatpush1.bf16.msra.mxu0 0
        %573 = vmatprep.subr.bf16.mxu0 0
        %574 = vmatpush1.bf16.msra.mxu0 0
        %575 = vmatprep.subr.bf16.mxu0 0
        %576 = vmatpush1.bf16.msra.mxu0 0
        %577 = vmatprep.mubr.bf16.mxu0 0
        %578 = vmatmul.mubr.bf16.gmra.mrb[0].mxu0 %v471
        %v579 = vpop.f32.mrb[0].mxu0
        %v580 = vadd.f32 %v495, %v579
        %v581 = vpop.f32.mrb[0].mxu0
        %v582 = vpop.f32.mrb[0].mxu0
        %v583 = vpop.f32.mrb[0].mxu0
        %584 = vdwg.mxu0
        %v585 = vmax.f32 %v580, 0.0
        %v586 = vpack.c.bf16 %v585, %v585
        %v587 = vld [vmem:[%s5] sm:$0xf]
        %v588 = vld [vmem:[%s5 + $0x4] sm:$0xf]
        %v589 = vld [vmem:[%s5 + $0x8] sm:$0xf]
        %v590 = vld [vmem:[%s5 + $0xc] sm:$0xf]
        %v591 = vld [vmem:[%s5 + $0x10] sm:$0xf]
        %v592 = vld [vmem:[%s5 + $0x14] sm:$0xf]
        %v593 = vld [vmem:[%s5 + $0x18] sm:$0xf]
        %v594 = vld [vmem:[%s5 + $0x1c] sm:$0xf]
        %v595 = vld [vmem:[%s5 + $0x20] sm:$0xf]
        %v596 = vld [vmem:[%s5 + $0x24] sm:$0xf]
        %v597 = vld [vmem:[%s5 + $0x28] sm:$0xf]
        %v598 = vld [vmem:[%s5 + $0x2c] sm:$0xf]
        %v599 = vld [vmem:[%s5 + $0x30] sm:$0xf]
        %v600 = vld [vmem:[%s5 + $0x34] sm:$0xf]
        %v601 = vld [vmem:[%s5 + $0x38] sm:$0xf]
        %v602 = vld [vmem:[%s5 + $0x3c] sm:$0xf]
        %v603 = vld [vmem:[%s6] sm:$0x1]
        %v605 = vlaneseq
        %v606 = vshrl.u32 %v605, 7
        %v607 = vsub.s32 0, %v606
        %v608 = vrot.slane %v603, %v607
        %v626 = vunpack.c.l.b16 %v587
        %v627 = vunpack.c.l.b16 %v588
        %v628 = vunpack.c.l.b16 %v589
        %v629 = vunpack.c.l.b16 %v590
        %v630 = vunpack.c.l.b16 %v591
        %v631 = vunpack.c.l.b16 %v592
        %v632 = vunpack.c.l.b16 %v593
        %v633 = vunpack.c.l.b16 %v594
        %v634 = vunpack.c.l.b16 %v595
        %v635 = vunpack.c.l.b16 %v596
        %v636 = vunpack.c.l.b16 %v597
        %v637 = vunpack.c.l.b16 %v598
        %v638 = vunpack.c.l.b16 %v599
        %v639 = vunpack.c.l.b16 %v600
        %v640 = vunpack.c.l.b16 %v601
        %v641 = vunpack.c.l.b16 %v602
        %v642 = vpack.c.b16 %v627, %v626
        %v643 = vpack.c.b16 %v629, %v628
        %v644 = vpack.c.b16 %v631, %v630
        %v645 = vpack.c.b16 %v633, %v632
        %v646 = vpack.c.b16 %v635, %v634
        %v647 = vpack.c.b16 %v637, %v636
        %v648 = vpack.c.b16 %v639, %v638
        %v649 = vpack.c.b16 %v641, %v640
        %658 = vmatprep.subr.bf16.mxu0 0
        %659 = vmatpush1.bf16.msra.mxu0 %v642
        %660 = vmatprep.subr.bf16.mxu0 0
        %661 = vmatpush1.bf16.msra.mxu0 %v643
        %662 = vmatprep.subr.bf16.mxu0 0
        %663 = vmatpush1.bf16.msra.mxu0 %v644
        %664 = vmatprep.subr.bf16.mxu0 0
        %665 = vmatpush1.bf16.msra.mxu0 %v645
        %666 = vmatprep.subr.bf16.mxu0 0
        %667 = vmatpush1.bf16.msra.mxu0 %v646
        %668 = vmatprep.subr.bf16.mxu0 0
        %669 = vmatpush1.bf16.msra.mxu0 %v647
        %670 = vmatprep.subr.bf16.mxu0 0
        %671 = vmatpush1.bf16.msra.mxu0 %v648
        %672 = vmatprep.subr.bf16.mxu0 0
        %673 = vmatpush1.bf16.msra.mxu0 %v649
        %674 = vmatprep.subr.bf16.mxu0 0
        %675 = vmatpush1.bf16.msra.mxu0 0
        %676 = vmatprep.subr.bf16.mxu0 0
        %677 = vmatpush1.bf16.msra.mxu0 0
        %678 = vmatprep.subr.bf16.mxu0 0
        %679 = vmatpush1.bf16.msra.mxu0 0
        %680 = vmatprep.subr.bf16.mxu0 0
        %681 = vmatpush1.bf16.msra.mxu0 0
        %682 = vmatprep.subr.bf16.mxu0 0
        %683 = vmatpush1.bf16.msra.mxu0 0
        %684 = vmatprep.subr.bf16.mxu0 0
        %685 = vmatpush1.bf16.msra.mxu0 0
        %686 = vmatprep.subr.bf16.mxu0 0
        %687 = vmatpush1.bf16.msra.mxu0 0
        %688 = vmatprep.subr.bf16.mxu0 0
        %689 = vmatpush1.bf16.msra.mxu0 0
        %690 = vmatprep.mubr.bf16.mxu0 0
        %691 = vmatmul.mubr.bf16.gmra.mrb[0].mxu0 %v586
        %v692 = vpop.f32.mrb[0].mxu0
        %v693 = vadd.f32 %v608, %v692
        %v694 = vpop.f32.mrb[0].mxu0
        %v695 = vpop.f32.mrb[0].mxu0
        %v696 = vpop.f32.mrb[0].mxu0
        %697 = vdwg.mxu0
        %v698 = vlaneseq
        %v699 = vand.u32 %v698, 127
        %v700 = vmax.f32 %v693, 0.0
        %v701 = vand.u32 2147483647, %v693
        %v702 = vsub.f32 0.0, %v701
        %v703 = vmul.f32 %v702, 1.442695
        %v704 = vpow.pop %v703
        %v705 = vadd.f32 %v704, 1.0
        %v706 = vlog2.pop %v705
        %v707 = vmul.f32 %v706, 0.6931472
        %v708 = vmul.f32 -0.5, %v704
        %v709 = vadd.f32 %v708, 1.0
        %v710 = vmul.f32 %v709, %v704
        %v711 = vand.u32 2147483647, %v704
        %vm712 = vcmp.lt.f32.partialorder %v711, 0.0004427343
        %v713 = vsel %vm712, %v710, %v707
        %v714 = vadd.f32 %v700, %v713
        %v715 = vmul.f32 %v714, 0.9
        %v716 = vadd.f32 %v715, 0.1
        %vm717 = vcmp.eq.s32.totalorder %v699, 0
        %v718 = vsel %vm717, %v693, %v716
        %vm719 = vcmask 15360
        %720 = vst.msk [vmem:[%s333] sm:$0xff] %vm719, %v718
        %p721 = scmp.lt.s32.totalorder %s23, 1
        %s722 = scalar_select %p721, %s23, 1
        %p723 = scmp.lt.s32.totalorder %s24, 0
        %s724 = scalar_select %p723, %s24, 0
        %s725 = sadd.s32 %s724, %s722
        %s726 = smul.addr %s725, 8
        %s727 = scalar_lea.vmem %s7, %s726
        // Predicated region
        $region53: #{tpu_custom_call.1} parent=47 // pred_check
          %p728 = pneg %p210
        $region54: #{tpu_custom_call.1} parent=47 // pred_check_branch
          %730 = sbr.rel (%p728) target = $region56
        $region55: #{tpu_custom_call.1} parent=47 // pred_region
          _
        $region56: #{tpu_custom_call.1} parent=47 // pred_fallthru
          _
      $region48: #{tpu_custom_call.1} parent=5 // pred_fallthru
        _
      %p731 = scmp.le.s32.totalorder 2, %s14
      // Predicated region
      $region57: #{tpu_custom_call.1} parent=5 // pred_check
        %p732 = pneg %p731
      $region58: #{tpu_custom_call.1} parent=5 // pred_check_branch
        %734 = sbr.rel (%p732) target = $region60
      $region59: #{tpu_custom_call.1} parent=5 // pred_region
        %s735 = ssub.s32 %s14, 2
        // Predicated region
        $region61: #{tpu_custom_call.1} parent=59 // pred_check
          %p736 = pneg %p216
        $region62: #{tpu_custom_call.1} parent=59 // pred_check_branch
          %738 = sbr.rel (%p736) target = $region64
        $region63: #{tpu_custom_call.1} parent=59 // pred_region
          %p739 = scmp.lt.s32.totalorder %s25, 1
          %s740 = scalar_select %p739, %s25, 1
          %p741 = scmp.lt.s32.totalorder %s26, 0
          %s742 = scalar_select %p741, %s26, 0
          %s743 = sadd.s32 %s742, %s740
          %s744 = smul.addr %s743, 8
          %s745 = scalar_lea.vmem %s7, %s744
        $region64: #{tpu_custom_call.1} parent=59 // pred_fallthru
          _
      $region60: #{tpu_custom_call.1} parent=5 // pred_fallthru
        _
    $region6: #{tpu_custom_call.1} parent=1 // loop_footer
      %s18 = sadd.s32 1, %s14
    $region7: #{tpu_custom_call.1} parent=1 // loop_footer_branch
      %13 = sbr.rel target = $region3
    $region8: #{tpu_custom_call.1} parent=1 // loop_exit
      _
    %746 = vsyncpa [#allocation3], 1
    %s747 = scalar_lea.sflag [#allocation3], 1
    %748 = vsyncpa %s747, 1

</llo_original>
